<compile_context>
chip_gen: v7x
topology: tpu7x:2x2x1
jax: 0.10.0
libtpu: 0.0.40
codegen_flags: <defaults>
</compile_context>

<pallas_src>
import jax
import jax.numpy as jnp
import numpy as np
from jax.experimental import pallas as pl
from jax.experimental.pallas import tpu as pltpu

# Deterministic "parameter" matching nn.Parameter in __init__ (shape (1,1,3,3)).
LAPLACIAN = [[-1.0, -1.0, -1.0],
             [-1.0,  8.0, -1.0],
             [-1.0, -1.0, -1.0]]


def lap_kernel(x_ref, o_ref):
    # x_ref / o_ref: (3, H, W) slab = channels 0..2 of one batch element.
    x = x_ref[...].astype(jnp.float32)
    _, H, W = x.shape
    # Separable zero-padded 3x3 box sum:
    #   rowsum[i,j] = x[i-1,j] + x[i,j] + x[i+1,j]          (zero pad along H)
    #   boxsum[i,j] = rowsum[i,j-1] + rowsum[i,j] + rowsum[i,j+1]  (zero pad W)
    # Laplacian kernel [[-1,-1,-1],[-1,8,-1],[-1,-1,-1]]  ==  9*x - boxsum.
    xp = jnp.pad(x, ((0, 0), (1, 1), (0, 0)))                      # (3, H+2, W)
    rowsum = xp[:, 0:H, :] + xp[:, 1:H + 1, :] + xp[:, 2:H + 2, :]  # (3, H, W)
    rp = jnp.pad(rowsum, ((0, 0), (0, 0), (1, 1)))                 # (3, H, W+2)
    boxsum = rp[:, :, 0:W] + rp[:, :, 1:W + 1] + rp[:, :, 2:W + 2]  # (3, H, W)
    o_ref[...] = (9.0 * x - boxsum).astype(o_ref.dtype)


def get_lap_gradient_nopadding(x):
    """x: (N, C, H, W) with C >= 3 -> (N, 3, H, W). Laplacian on channels 0..2."""
    N, C, H, W = x.shape
    assert C >= 3, "forward uses channels 0, 1, 2"

    itemsize = jnp.dtype(x.dtype).itemsize
    # Per-block footprint: in+out (double-buffered) plus ~4 f32 temporaries.
    block_bytes = 3 * H * W * max(itemsize, 4)
    assert 8 * block_bytes <= 24 * 1024 * 1024, (
        "block too large for conservative VMEM budget; "
        "TODO(synk): add halo-based H tiling for very large H*W images")

    # Full array in, index_map pins the channel block to 0 (covers ch 0..2).
    # NOTE: when W < 128 the output stores are lane-masked; unavoidable at
    # tiny spatial sizes without repacking rows into lanes.
    in_spec = pl.BlockSpec((pl.Squeezed(), 3, H, W), lambda n: (n, 0, 0, 0))
    out_spec = pl.BlockSpec((pl.Squeezed(), 3, H, W), lambda n: (n, 0, 0, 0))

    cost = pl.CostEstimate(
        flops=6 * N * 3 * H * W,
        transcendentals=0,
        bytes_accessed=2 * N * 3 * H * W * itemsize)

    return pl.pallas_call(
        lap_kernel,
        out_shape=jax.ShapeDtypeStruct((N, 3, H, W), x.dtype),
        grid=(N,),
        in_specs=[in_spec],
        out_specs=out_spec,
        compiler_params=pltpu.CompilerParams(
            dimension_semantics=("parallel",),
            vmem_limit_bytes=32 * 1024 * 1024),
        cost_estimate=cost,
    )(x)


def _reference(x):
    # Pure-JAX reference using XLA convolution (same semantics as F.conv2d).
    w = jnp.asarray(LAPLACIAN, jnp.float32)[None, None]  # (1,1,3,3), OIHW
    dn = jax.lax.conv_dimension_numbers(
        x[:, :1].shape, w.shape, ('NCHW', 'OIHW', 'NCHW'))
    outs = []
    for c in range(3):
        outs.append(
            jax.lax.conv_general_dilated(
                x[:, c:c + 1].astype(jnp.float32), w,
                window_strides=(1, 1), padding='SAME',
                dimension_numbers=dn))
    return jnp.concatenate(outs, axis=1).astype(x.dtype)


if __name__ == "__main__":
    key = jax.random.PRNGKey(0)
    N, C, H, W = 2, 4, 16, 16      # C > 3 exercises the no-slice channel path
    x = jax.random.normal(key, (N, C, H, W), dtype=jnp.float32)

    out = jax.block_until_ready(get_lap_gradient_nopadding(x))
    ref = jax.block_until_ready(_reference(x))

    np.testing.assert_allclose(np.asarray(out), np.asarray(ref),
                               rtol=1e-5, atol=1e-5)
    assert out.shape == (N, 3, H, W)
    print("KERNEL_OK")
</pallas_src>

<mosaic_0001>
module attributes {stable_mosaic.version = 11 : i64} {
  func.func @lap_kernel(%arg0: i32, %arg1: memref<1x3x16x16xf32, #tpu.memory_space<vmem>>, %arg2: memref<1x3x16x16xf32, #tpu.memory_space<vmem>>) attributes {dimension_semantics = [#tpu.dimension_semantics<parallel>], iteration_bounds = array<i64: 2>, scalar_prefetch = 0 : i64, scratch_operands = 0 : i64, tpu.core_type = #tpu.core_type<tc>, window_params = [{transform_indices = @transform_0, window_bounds = array<i64: 1, 3, 16, 16>}, {transform_indices = @transform_1, window_bounds = array<i64: 1, 3, 16, 16>}]} {
    %c0 = arith.constant 0 : index
    %c0_0 = arith.constant 0 : index
    %c0_1 = arith.constant 0 : index
    %c0_2 = arith.constant 0 : index
    %0 = vector.load %arg1[%c0, %c0_0, %c0_1, %c0_2] : memref<1x3x16x16xf32, #tpu.memory_space<vmem>>, vector<1x3x16x16xf32>
    %1 = vector.shape_cast %0 : vector<1x3x16x16xf32> to vector<3x16x16xf32>
    %c0_i32 = arith.constant 0 : i32
    %2 = arith.sitofp %c0_i32 : i32 to f32
    %3 = vector.broadcast %2 : f32 to vector<3x1x16xf32>
    %4 = tpu.concatenate %3, %1 in 1 : vector<3x1x16xf32>, vector<3x16x16xf32> -> vector<3x17x16xf32>
    %5 = vector.broadcast %2 : f32 to vector<3x1x16xf32>
    %6 = tpu.concatenate %4, %5 in 1 : vector<3x17x16xf32>, vector<3x1x16xf32> -> vector<3x18x16xf32>
    %7 = vector.extract_strided_slice %6 {offsets = [0, 0, 0], sizes = [3, 16, 16], strides = [1, 1, 1]} : vector<3x18x16xf32> to vector<3x16x16xf32>
    %8 = vector.extract_strided_slice %6 {offsets = [0, 1, 0], sizes = [3, 16, 16], strides = [1, 1, 1]} : vector<3x18x16xf32> to vector<3x16x16xf32>
    %9 = arith.addf %7, %8 : vector<3x16x16xf32>
    %10 = vector.extract_strided_slice %6 {offsets = [0, 2, 0], sizes = [3, 16, 16], strides = [1, 1, 1]} : vector<3x18x16xf32> to vector<3x16x16xf32>
    %11 = arith.addf %9, %10 : vector<3x16x16xf32>
    %c0_i32_3 = arith.constant 0 : i32
    %12 = arith.sitofp %c0_i32_3 : i32 to f32
    %13 = vector.broadcast %12 : f32 to vector<3x16x1xf32>
    %14 = tpu.concatenate %13, %11 in 2 : vector<3x16x1xf32>, vector<3x16x16xf32> -> vector<3x16x17xf32>
    %15 = vector.broadcast %12 : f32 to vector<3x16x1xf32>
    %16 = tpu.concatenate %14, %15 in 2 : vector<3x16x17xf32>, vector<3x16x1xf32> -> vector<3x16x18xf32>
    %17 = vector.extract_strided_slice %16 {offsets = [0, 0, 0], sizes = [3, 16, 16], strides = [1, 1, 1]} : vector<3x16x18xf32> to vector<3x16x16xf32>
    %18 = vector.extract_strided_slice %16 {offsets = [0, 0, 1], sizes = [3, 16, 16], strides = [1, 1, 1]} : vector<3x16x18xf32> to vector<3x16x16xf32>
    %19 = arith.addf %17, %18 : vector<3x16x16xf32>
    %20 = vector.extract_strided_slice %16 {offsets = [0, 0, 2], sizes = [3, 16, 16], strides = [1, 1, 1]} : vector<3x16x18xf32> to vector<3x16x16xf32>
    %21 = arith.addf %19, %20 : vector<3x16x16xf32>
    %cst = arith.constant 9.000000e+00 : f32
    %22 = vector.broadcast %cst : f32 to vector<3x16x16xf32>
    %23 = arith.mulf %22, %1 : vector<3x16x16xf32>
    %24 = arith.subf %23, %21 : vector<3x16x16xf32>
    %c0_4 = arith.constant 0 : index
    %c0_5 = arith.constant 0 : index
    %c0_6 = arith.constant 0 : index
    %c0_7 = arith.constant 0 : index
    %25 = vector.load %arg2[%c0_4, %c0_5, %c0_6, %c0_7] : memref<1x3x16x16xf32, #tpu.memory_space<vmem>>, vector<1x3x16x16xf32>
    %26 = vector.shape_cast %25 : vector<1x3x16x16xf32> to vector<3x16x16xf32>
    %27 = vector.shape_cast %24 : vector<3x16x16xf32> to vector<1x3x16x16xf32>
    tpu.vector_store %arg2[%c0_4, %c0_5, %c0_6, %c0_7], %27 {strides = array<i32>} : memref<1x3x16x16xf32, #tpu.memory_space<vmem>>, vector<1x3x16x16xf32>,
    return
  }
  func.func @transform_0(%arg0: i32) -> (i32, i32, i32, i32) {
    %c0_i32 = arith.constant 0 : i32
    %c0_i32_0 = arith.constant 0 : i32
    %c0_i32_1 = arith.constant 0 : i32
    %c0_i32_2 = arith.constant 0 : i32
    return %arg0, %c0_i32, %c0_i32_0, %c0_i32_1 : i32, i32, i32, i32
  }
  func.func @transform_1(%arg0: i32) -> (i32, i32, i32, i32) {
    %c0_i32 = arith.constant 0 : i32
    %c0_i32_0 = arith.constant 0 : i32
    %c0_i32_1 = arith.constant 0 : i32
    %c0_i32_2 = arith.constant 0 : i32
    return %arg0, %c0_i32, %c0_i32_0, %c0_i32_1 : i32, i32, i32, i32
  }
}

</mosaic_0001>

<llo_original>
// kernel: tpu_custom_call.1
$region0: #{tpu_custom_call.1}
  #allocation0 [shape = 'u32[]', space=smem, size = 0x4, offset = 0x4, fixed_abs, tag = 'smem constant byte address 0x4 - core index']
  #allocation1 [shape = 'u32[144,128]{1,0:T(1,128)}', space=vmem, size = 0x12000, scoped, tag = 'internal scratch']
  %s0 = inlined_call_operand.hbm [shape: f32[2,4,16,16], index: 0, kind: input, shape index: {}]
  %s1 = inlined_call_operand.hbm [shape: f32[2,3,16,16], index: 1, kind: output, shape index: {}]
  %s2 = sld [smem:[#allocation0]]
  $region41: #{tpu_custom_call.1} parent=0
    _
  %s4 = ssub.s32 1, %s2
  %s5 = scalar_select 0, %s4, %s2
  $region1: #{tpu_custom_call.1} parent=0
    #allocation2 [shape = 'u8[49152]{0}', space=vmem, size = 0xc000, scoped, tag = 'input window, operand 0']
    #allocation3 [shape = 's32[2]{0}', space=sflag, size = 0x8, scoped, tag = 'scoped memory for tpu_custom_call.1']
    #allocation4 [shape = 's32[2]{0}', space=sflag, size = 0x8, scoped, tag = 'scoped memory for tpu_custom_call.1']
    #allocation5 [shape = 'u8[49152]{0}', space=vmem, size = 0xc000, scoped, tag = 'output window, operand 0']
    %6 = vsyncpa [#allocation3], 0
    %s7 = scalar_lea.sflag [#allocation3], 1
    %8 = vsyncpa %s7, 0
    %9 = vsyncpa [#allocation4], 0
    %s10 = scalar_lea.sflag [#allocation4], 1
    %11 = vsyncpa %s10, 0
    loop: start=0, step=1, limit=4
    $region2: #{tpu_custom_call.1} parent=1 // loop_pre_header
      _
    $region3: #{tpu_custom_call.1} parent=1 // loop_header
      %s13 = sphi 0, %s17
      %p14 = scmp.ge.s32.totalorder %s13, 4
      %s23 = sphi 0, %s25
      %s26 = sphi 0, %s23
      %s27 = sphi 0, %s26
      %s43 = sphi 0, %s27
      %s49 = sphi 0, %s51
      %s52 = sphi 0, %s49
      %s53 = sphi 0, %s52
      %s69 = sphi 0, %s53
    $region4: #{tpu_custom_call.1} parent=1 // loop_header_branch
      %16 = sbr.rel (%p14) target = $region8
    $region5: #{tpu_custom_call.1} parent=1 // loop_body
      %s18 = ssub.s32 %s13, 1
      %s19 = ssub.s32 %s13, 2
      %s20 = sadd.s32 %s13, 1
      %s21 = ssub.s32 %s13, %s20
      %p22 = scmp.eq.s32.totalorder %s21, 0
      %s24 = sadd.s32 %s23, 1
      %s25 = scalar_select %p22, %s23, %s24
      %p28 = pneg %p22
      %p29 = scmp.eq.s32.totalorder %s13, 1
      %p30 = por %p28, %p29
      %p31 = scmp.ne.s32.totalorder %s23, %s26
      %p32 = scmp.eq.s32.totalorder %s13, 0
      %p33 = por %p31, %p32
      %p34 = scmp.ne.s32.totalorder %s23, %s26
      %p35 = scmp.eq.s32.totalorder %s18, 1
      %p36 = por %p34, %p35
      %p37 = scmp.ne.s32.totalorder %s26, %s27
      %p38 = scmp.eq.s32.totalorder %s18, 0
      %p39 = por %p37, %p38
      %p40 = scmp.ne.s32.totalorder %s26, %s27
      %p41 = scmp.eq.s32.totalorder %s19, 1
      %p42 = por %p40, %p41
      %p44 = scmp.ne.s32.totalorder %s27, %s43
      %p45 = scmp.eq.s32.totalorder %s19, 0
      %p46 = por %p44, %p45
      %s47 = ssub.s32 %s13, %s20
      %p48 = scmp.eq.s32.totalorder %s47, 0
      %s50 = sadd.s32 %s49, 1
      %s51 = scalar_select %p48, %s49, %s50
      %p54 = pneg %p48
      %p55 = scmp.eq.s32.totalorder %s13, 1
      %p56 = por %p54, %p55
      %p57 = scmp.ne.s32.totalorder %s49, %s52
      %p58 = scmp.eq.s32.totalorder %s13, 0
      %p59 = por %p57, %p58
      %p60 = scmp.ne.s32.totalorder %s49, %s52
      %p61 = scmp.eq.s32.totalorder %s18, 1
      %p62 = por %p60, %p61
      %p63 = scmp.ne.s32.totalorder %s52, %s53
      %p64 = scmp.eq.s32.totalorder %s18, 0
      %p65 = por %p63, %p64
      %p66 = scmp.ne.s32.totalorder %s52, %s53
      %p67 = scmp.eq.s32.totalorder %s19, 1
      %p68 = por %p66, %p67
      %p70 = scmp.ne.s32.totalorder %s53, %s69
      %p71 = scmp.eq.s32.totalorder %s19, 0
      %p72 = por %p70, %p71
      %p73 = scmp.le.s32.totalorder 1, %s13
      %p74 = scmp.lt.s32.totalorder %s13, 3
      %p75 = pnand %p73, %p74
      %p76 = pneg %p75
      // Predicated region
      $region9: #{tpu_custom_call.1} parent=5 // pred_check
        _
      $region10: #{tpu_custom_call.1} parent=5 // pred_check_branch
        %78 = sbr.rel (%p75) target = $region12
      $region11: #{tpu_custom_call.1} parent=5 // pred_region
        %s79 = ssub.s32 %s13, 1
      $region12: #{tpu_custom_call.1} parent=5 // pred_fallthru
        _
      %p80 = scmp.lt.s32.totalorder %s13, 2
      // Predicated region
      $region13: #{tpu_custom_call.1} parent=5 // pred_check
        %p81 = pneg %p80
      $region14: #{tpu_custom_call.1} parent=5 // pred_check_branch
        %83 = sbr.rel (%p81) target = $region16
      $region15: #{tpu_custom_call.1} parent=5 // pred_region
        // Predicated region
        $region17: #{tpu_custom_call.1} parent=15 // pred_check
          %p84 = pneg %p33
        $region18: #{tpu_custom_call.1} parent=15 // pred_check_branch
          %86 = sbr.rel (%p84) target = $region20
        $region19: #{tpu_custom_call.1} parent=15 // pred_region
          %s87 = sand.u32 %s23, 1
          %s88 = scalar_lea.sflag [#allocation3], %s87
          %s89 = sand.u32 %s23, 1
          %s90 = smul.addr %s89, 48
          %s91 = scalar_lea.vmem [#allocation2], %s90
          %s93 = ssub.s32 768, 768
          %94 = vsyncadd %s88, %s93
          %s95 = smul.addr %s13, 8
          %s96 = smul.addr %s95, 128
          %s97 = scalar_lea.hbm %s0, %s96
          %s98 = sshll.u32 %s91, 4
          %s99 = int_to_ptr.vmem [resolvable:$true] %s98
          %104 = dma.hbm_to_vmem [thread:$0]  %s97, 768, %s99, %s88, 128, 128, 8
        $region20: #{tpu_custom_call.1} parent=15 // pred_fallthru
          _
      $region16: #{tpu_custom_call.1} parent=5 // pred_fallthru
        _
      %p105 = scmp.le.s32.totalorder 1, %s13
      %p106 = scmp.lt.s32.totalorder %s13, 3
      %p107 = pnand %p105, %p106
      %p108 = pneg %p107
      // Predicated region
      $region21: #{tpu_custom_call.1} parent=5 // pred_check
        _
      $region22: #{tpu_custom_call.1} parent=5 // pred_check_branch
        %110 = sbr.rel (%p107) target = $region24
      $region23: #{tpu_custom_call.1} parent=5 // pred_region
        %s111 = ssub.s32 %s13, 1
        %s112 = sand.u32 %s26, 1
        %s113 = scalar_lea.sflag [#allocation3], %s112
        %s114 = sand.u32 %s26, 1
        %s115 = smul.addr %s114, 48
        %s116 = scalar_lea.vmem [#allocation2], %s115
        // Predicated region
        $region25: #{tpu_custom_call.1} parent=23 // pred_check
          %p117 = pneg %p39
        $region26: #{tpu_custom_call.1} parent=23 // pred_check_branch
          %119 = sbr.rel (%p117) target = $region28
        $region27: #{tpu_custom_call.1} parent=23 // pred_region
          %120 = dma.done %s113, 768
        $region28: #{tpu_custom_call.1} parent=23 // pred_fallthru
          _
        %s121 = sand.u32 %s26, 1
        %s122 = scalar_lea.sflag [#allocation3], %s121
        %s123 = sand.u32 %s26, 1
        %s124 = smul.addr %s123, 48
        %s125 = scalar_lea.vmem [#allocation2], %s124
        %p126 = pneg %p39
        %p127 = pneg %p36
        %p128 = pneg %p65
        %p129 = pneg %p62
        %s130 = sand.u32 %s52, 1
        %s131 = scalar_lea.sflag [#allocation4], %s130
        %s132 = sand.u32 %s52, 1
        %s133 = smul.addr %s132, 48
        %s134 = scalar_lea.vmem [#allocation5], %s133
        %v135 = vld [vmem:[%s116] sm:$0xff]
        %v136 = vld [vmem:[%s116 + $0x8] sm:$0xff]
        %v137 = vld [vmem:[%s116 + $0x10] sm:$0xff]
        %v138 = vld [vmem:[%s116 + $0x18] sm:$0xff]
        %v139 = vld [vmem:[%s116 + $0x20] sm:$0xff]
        %v140 = vld [vmem:[%s116 + $0x28] sm:$0xff]
        %vm147 = vcmask 1040384
        %v148 = vrot.slane %v135, 7
        %v149 = vrot.slane %v136, 7
        %v150 = vsel %vm147, %v148, %v149
        %v151 = vrot.slane %v137, 7
        %v152 = vrot.slane %v138, 7
        %v153 = vsel %vm147, %v151, %v152
        %v154 = vrot.slane %v139, 7
        %v155 = vrot.slane %v140, 7
        %v156 = vsel %vm147, %v154, %v155
        %v166 = vsel %vm147, 0.0, %v148
        %v167 = vsel %vm147, 0.0, %v151
        %v168 = vsel %vm147, 0.0, %v154
        %v169 = vsel %vm147, %v149, 0.0
        %v170 = vsel %vm147, %v152, 0.0
        %v171 = vsel %vm147, %v155, 0.0
        %vm178 = vcmask 1046528
        %v179 = vrot.slane %v166, 1
        %v180 = vrot.slane %v150, 1
        %v181 = vsel %vm178, %v179, %v180
        %v182 = vrot.slane %v169, 1
        %v183 = vsel %vm178, %v180, %v182
        %v184 = vrot.slane %v167, 1
        %v185 = vrot.slane %v153, 1
        %v186 = vsel %vm178, %v184, %v185
        %v187 = vrot.slane %v170, 1
        %v188 = vsel %vm178, %v185, %v187
        %v189 = vrot.slane %v168, 1
        %v190 = vrot.slane %v156, 1
        %v191 = vsel %vm178, %v189, %v190
        %v192 = vrot.slane %v171, 1
        %v193 = vsel %vm178, %v190, %v192
        %v200 = vadd.f32 %v166, %v181
        %v201 = vadd.f32 %v150, %v183
        %v202 = vadd.f32 %v167, %v186
        %v203 = vadd.f32 %v153, %v188
        %v204 = vadd.f32 %v168, %v191
        %v205 = vadd.f32 %v156, %v193
        %vm206 = vcmask 1045504
        %v207 = vrot.slane %v166, 2
        %v208 = vrot.slane %v150, 2
        %v209 = vsel %vm206, %v207, %v208
        %v210 = vrot.slane %v169, 2
        %v211 = vsel %vm206, %v208, %v210
        %v212 = vrot.slane %v167, 2
        %v213 = vrot.slane %v153, 2
        %v214 = vsel %vm206, %v212, %v213
        %v215 = vrot.slane %v170, 2
        %v216 = vsel %vm206, %v213, %v215
        %v217 = vrot.slane %v168, 2
        %v218 = vrot.slane %v156, 2
        %v219 = vsel %vm206, %v217, %v218
        %v220 = vrot.slane %v171, 2
        %v221 = vsel %vm206, %v218, %v220
        %v228 = vadd.f32 %v200, %v209
        %v229 = vadd.f32 %v201, %v211
        %v230 = vadd.f32 %v202, %v214
        %v231 = vadd.f32 %v203, %v216
        %v232 = vadd.f32 %v204, %v219
        %v233 = vadd.f32 %v205, %v221
        %240 = vrot.lane.b32.xlu0 %v228, 1
        %v241 = vpop.permute.xlu0 %240
        %242 = vrot.lane.b32.xlu0 %v229, 1
        %v243 = vpop.permute.xlu0 %242
        %244 = vrot.lane.b32.xlu0 %v230, 1
        %v245 = vpop.permute.xlu0 %244
        %246 = vrot.lane.b32.xlu0 %v231, 1
        %v247 = vpop.permute.xlu0 %246
        %248 = vrot.lane.b32.xlu0 %v232, 1
        %v249 = vpop.permute.xlu0 %248
        %250 = vrot.lane.b32.xlu0 %v233, 1
        %v251 = vpop.permute.xlu0 %250
        %vm258 = vcmask 7168
        %v259 = vsel %vm258, 0.0, %v241
        %v260 = vsel %vm258, 0.0, %v243
        %v261 = vsel %vm258, 0.0, %v245
        %v262 = vsel %vm258, 0.0, %v247
        %v263 = vsel %vm258, 0.0, %v249
        %v264 = vsel %vm258, 0.0, %v251
        %vm265 = vcmask 138240
        %v266 = vsel %vm265, %v259, 0.0
        %v267 = vsel %vm265, %v260, 0.0
        %v268 = vsel %vm265, %v261, 0.0
        %v269 = vsel %vm265, %v262, 0.0
        %v270 = vsel %vm265, %v263, 0.0
        %v271 = vsel %vm265, %v264, 0.0
        %278 = vrot.lane.b32.xlu0 %v266, 127
        %v279 = vpop.permute.xlu0 %278
        %280 = vrot.lane.b32.xlu0 %v267, 127
        %v281 = vpop.permute.xlu0 %280
        %282 = vrot.lane.b32.xlu0 %v268, 127
        %v283 = vpop.permute.xlu0 %282
        %284 = vrot.lane.b32.xlu0 %v269, 127
        %v285 = vpop.permute.xlu0 %284
        %286 = vrot.lane.b32.xlu0 %v270, 127
        %v287 = vpop.permute.xlu0 %286
        %288 = vrot.lane.b32.xlu0 %v271, 127
        %v289 = vpop.permute.xlu0 %288
        %v296 = vadd.f32 %v266, %v279
        %v297 = vadd.f32 %v267, %v281
        %v298 = vadd.f32 %v268, %v283
        %v299 = vadd.f32 %v269, %v285
        %v300 = vadd.f32 %v270, %v287
        %v301 = vadd.f32 %v271, %v289
        %302 = vrot.lane.b32.xlu0 %v266, 126
        %v303 = vpop.permute.xlu0 %302
        %304 = vrot.lane.b32.xlu0 %v267, 126
        %v305 = vpop.permute.xlu0 %304
        %306 = vrot.lane.b32.xlu0 %v268, 126
        %v307 = vpop.permute.xlu0 %306
        %308 = vrot.lane.b32.xlu0 %v269, 126
        %v309 = vpop.permute.xlu0 %308
        %310 = vrot.lane.b32.xlu0 %v270, 126
        %v311 = vpop.permute.xlu0 %310
        %312 = vrot.lane.b32.xlu0 %v271, 126
        %v313 = vpop.permute.xlu0 %312
        %v320 = vadd.f32 %v296, %v303
        %v321 = vadd.f32 %v297, %v305
        %v322 = vadd.f32 %v298, %v307
        %v323 = vadd.f32 %v299, %v309
        %v324 = vadd.f32 %v300, %v311
        %v325 = vadd.f32 %v301, %v313
        %v326 = vmul.f32 %v135, 9.0
        %v327 = vmul.f32 %v136, 9.0
        %v328 = vmul.f32 %v137, 9.0
        %v329 = vmul.f32 %v138, 9.0
        %v330 = vmul.f32 %v139, 9.0
        %v331 = vmul.f32 %v140, 9.0
        %v332 = vsub.f32 %v326, %v320
        %v333 = vsub.f32 %v327, %v321
        %v334 = vsub.f32 %v328, %v322
        %v335 = vsub.f32 %v329, %v323
        %v336 = vsub.f32 %v330, %v324
        %v337 = vsub.f32 %v331, %v325
        %vm338 = vcmask 130048
        %339 = vst.msk [vmem:[%s134] sm:$0xff] %vm338, %v332
        %340 = vst.msk [vmem:[%s134 + $0x8] sm:$0xff] %vm338, %v333
        %341 = vst.msk [vmem:[%s134 + $0x10] sm:$0xff] %vm338, %v334
        %342 = vst.msk [vmem:[%s134 + $0x18] sm:$0xff] %vm338, %v335
        %343 = vst.msk [vmem:[%s134 + $0x20] sm:$0xff] %vm338, %v336
        %344 = vst.msk [vmem:[%s134 + $0x28] sm:$0xff] %vm338, %v337
        %s345 = sand.u32 %s52, 1
        %s346 = scalar_lea.sflag [#allocation4], %s345
        %s347 = sand.u32 %s52, 1
        %s348 = smul.addr %s347, 48
        %s349 = scalar_lea.vmem [#allocation5], %s348
        // Predicated region
        $region29: #{tpu_custom_call.1} parent=23 // pred_check
          %p350 = pneg %p62
        $region30: #{tpu_custom_call.1} parent=23 // pred_check_branch
          %352 = sbr.rel (%p350) target = $region32
        $region31: #{tpu_custom_call.1} parent=23 // pred_region
          %s354 = ssub.s32 768, 768
          %355 = vsyncadd %s346, %s354
          %s356 = smul.addr %s18, 6
          %s357 = smul.addr %s356, 128
          %s358 = scalar_lea.hbm %s1, %s357
          %s359 = sshll.u32 %s349, 4
          %s360 = int_to_ptr.vmem [resolvable:$true] %s359
          %365 = dma.vmem_to_hbm [thread:$0]  %s360, 768, %s358, %s346, 128, 128, 8
        $region32: #{tpu_custom_call.1} parent=23 // pred_fallthru
          _
      $region24: #{tpu_custom_call.1} parent=5 // pred_fallthru
        _
      %p366 = scmp.le.s32.totalorder 2, %s13
      // Predicated region
      $region33: #{tpu_custom_call.1} parent=5 // pred_check
        %p367 = pneg %p366
      $region34: #{tpu_custom_call.1} parent=5 // pred_check_branch
        %369 = sbr.rel (%p367) target = $region36
      $region35: #{tpu_custom_call.1} parent=5 // pred_region
        %s370 = ssub.s32 %s13, 2
        // Predicated region
        $region37: #{tpu_custom_call.1} parent=35 // pred_check
          %p371 = pneg %p68
        $region38: #{tpu_custom_call.1} parent=35 // pred_check_branch
          %373 = sbr.rel (%p371) target = $region40
        $region39: #{tpu_custom_call.1} parent=35 // pred_region
          %s374 = sand.u32 %s53, 1
          %s375 = scalar_lea.sflag [#allocation4], %s374
          %s376 = sand.u32 %s53, 1
          %s377 = smul.addr %s376, 48
          %s378 = scalar_lea.vmem [#allocation5], %s377
          %379 = dma.done %s375, 768
        $region40: #{tpu_custom_call.1} parent=35 // pred_fallthru
          _
      $region36: #{tpu_custom_call.1} parent=5 // pred_fallthru
        _
    $region6: #{tpu_custom_call.1} parent=1 // loop_footer
      %s17 = sadd.s32 1, %s13
    $region7: #{tpu_custom_call.1} parent=1 // loop_footer_branch
      %12 = sbr.rel target = $region3
    $region8: #{tpu_custom_call.1} parent=1 // loop_exit
      _
    %380 = vsyncpa [#allocation3], 1
    %s381 = scalar_lea.sflag [#allocation3], 1
    %382 = vsyncpa %s381, 1
    %383 = vsyncpa [#allocation4], 1
    %s384 = scalar_lea.sflag [#allocation4], 1
    %385 = vsyncpa %s384, 1

</llo_original>
